<compile_context>
chip_gen: v7x
topology: tpu7x:2x2x1
jax: 0.10.0
libtpu: 0.0.40
codegen_flags: <defaults>
</compile_context>

<pallas_src>
import jax
import jax.numpy as jnp
import numpy as np
from jax.experimental import pallas as pl
from jax.experimental.pallas import tpu as pltpu

# ----------------------------- configuration -------------------------------
NUM_SERIES = 4
NUM_PREDICTORS = 8
HIDDEN = (32, 32)
EMBED_IDX = 2
NUM_EMBEDDINGS = 10
EMBEDDING_DIM = 3
FWD_COLS = tuple(i for i in range(NUM_PREDICTORS) if i != EMBED_IDX)  # 7 cols
IN_FEATURES = len(FWD_COLS) + EMBEDDING_DIM                            # 10


def _round_up(x, m):
    return ((x + m - 1) // m) * m


def _choose_tile_t(T, S, requested):
    """Largest lane tile that is a multiple of 128, <= requested / time extent,
    and keeps double-buffered blocks + worst-case in-kernel temporaries under
    ~40 MiB (fits v7x's 64 MiB VMEM with headroom; v5e/v6e have 128 MiB)."""
    per_lane_elem_bytes = (
        2 * S * NUM_PREDICTORS * 4            # x block, double-buffered
        + 2 * _round_up(S, 8) * 4             # out block, double-buffered
        + S * 4 * (16 + 24 + 32 + 32 + 32))   # onehot/xc/h1/h2 temporaries
    budget = 40 * 1024 * 1024
    cap = max(128, (budget // per_lane_elem_bytes) // 128 * 128)
    return max(128, min(requested, cap, _round_up(T, 128)))


# ------------------------------- Pallas kernel ------------------------------
def _mlp_series_kernel(x_ref, w1c_ref, b1_ref, w2T_ref, b2_ref,
                       ws_ref, bs_ref, o_ref):
    """Transposed (feature-on-sublane, time-on-lane) MLP + per-series reduce.

    x_ref : (S, P, TILE)       raw predictor block, all series (col 2 = codes)
    w1c   : (H1, P + E)        combined layer-1 weights: raw cols (code col
                               zeroed) followed by (embedding @ w1_emb).T
    b1    : (H1, 1)
    w2T   : (H2, H1)
    b2    : (H2, 1)
    ws    : (S, H2)            per-series output weights
    bs    : (S, 1)             per-series output biases
    o_ref : (S, TILE)          lane-dense output rows
    """
    S = x_ref.shape[0]
    tile = x_ref.shape[-1]

    # Hoisted loads / iota (JAX does not CSE broadcast_in_dim across the loop).
    w1c = w1c_ref[...]
    b1 = b1_ref[...]
    w2T = w2T_ref[...]
    b2 = b2_ref[...]
    ws = ws_ref[...]
    bs = bs_ref[...]
    k_ids = jax.lax.broadcasted_iota(jnp.int32, (NUM_EMBEDDINGS, tile), 0)

    for s in range(S):                                   # S is tiny (<= 4)
        x8 = x_ref[s]                                    # (P, TILE)

        # Embedding lookup as a one-hot (exact: codes are small non-negative
        # integers; astype matches torch's .to(long) truncation).
        codes = x8[EMBED_IDX:EMBED_IDX + 1, :].astype(jnp.int32)     # (1, TILE)
        onehot = (k_ids == codes).astype(jnp.float32)                # (E, TILE)

        # Single fused layer-1 matmul: concat at an 8-sublane boundary.
        xc = jnp.concatenate([x8, onehot], axis=0)                   # (P+E, TILE)
        h = jnp.dot(w1c, xc, preferred_element_type=jnp.float32)
        h = jnp.tanh(h + b1)                                         # (H1, TILE)

        # Layer 2.
        h = jnp.dot(w2T, h, preferred_element_type=jnp.float32)
        h = jnp.tanh(h + b2)                                         # (H2, TILE)

        # Per-series reduce on the MXU (idle) instead of VPU mul + XLU reduce.
        out = jnp.dot(ws[s:s + 1, :], h,
                      preferred_element_type=jnp.float32) + bs[s:s + 1, :]
        o_ref[s:s + 1, :] = out.astype(o_ref.dtype)                  # (1, TILE)


# ------------------------------ JAX wrapper ---------------------------------
def multi_series_state_nn_forward(params, inp, series_idx=None, tile_t=16384):
    """Pallas-backed equivalent of MultiSeriesStateNN.forward."""
    S, T, P = inp.shape
    assert P == NUM_PREDICTORS
    H1, H2 = HIDDEN

    # ---- layout plumbing (wrapper-side) ----
    tile_t = _choose_tile_t(T, S, tile_t)
    t_pad = _round_up(T, tile_t)
    x_t = jnp.transpose(inp.astype(jnp.float32), (0, 2, 1))          # (S, P, T)
    if t_pad != T:
        x_t = jnp.pad(x_t, ((0, 0), (0, 0), (0, t_pad - T)))         # (S, P, Tp)

    # ---- fold embedding + column selection into one layer-1 weight ----
    w1 = params["w1"].astype(jnp.float32)            # (IN_FEATURES, H1)
    w1_fwd = w1[:len(FWD_COLS)]                      # (7, H1)
    w1_emb = w1[len(FWD_COLS):]                      # (E_dim, H1)
    w1p = jnp.zeros((NUM_PREDICTORS, H1), jnp.float32)
    w1p = w1p.at[jnp.array(FWD_COLS)].set(w1_fwd)    # code column -> 0 weight
    we = params["embedding"].astype(jnp.float32) @ w1_emb            # (E, H1)
    w1c = jnp.concatenate([w1p.T, we.T], axis=1)     # (H1, P + E) = (32, 18)
    b1_c = params["b1"].reshape(H1, 1).astype(jnp.float32)
    w2_t = params["w2"].astype(jnp.float32).T        # (H2, H1)
    b2_c = params["b2"].reshape(H2, 1).astype(jnp.float32)

    # ---- per-series weight / bias selection (glue) ----
    if series_idx is None:
        ws = jnp.mean(params["series_weights"], axis=0, keepdims=True)
        bs = jnp.mean(params["series_biases"], axis=0, keepdims=True)
        ws = jnp.broadcast_to(ws, (S, H2))
        bs = jnp.broadcast_to(bs, (S, 1))
    else:
        sel = jnp.asarray(series_idx, dtype=jnp.int32)
        ws = params["series_weights"][sel]                            # (S, H2)
        bs = params["series_biases"][sel]                             # (S, 1)
    ws = ws.astype(jnp.float32)
    bs = bs.astype(jnp.float32)

    n_t = t_pad // tile_t
    grid = (n_t,)

    flops = 2 * S * t_pad * (H1 * (NUM_PREDICTORS + NUM_EMBEDDINGS)
                             + H1 * H2 + H2)
    weight_bytes = 4 * (H1 * (NUM_PREDICTORS + NUM_EMBEDDINGS) + H1
                        + H2 * H1 + H2 + S * H2 + S)
    cost = pl.CostEstimate(
        flops=flops,
        transcendentals=S * t_pad * (H1 + H2),
        bytes_accessed=4 * (S * NUM_PREDICTORS * t_pad + S * t_pad)
                       + weight_bytes)

    out = pl.pallas_call(
        _mlp_series_kernel,
        out_shape=jax.ShapeDtypeStruct((S, t_pad), jnp.float32),
        grid=grid,
        in_specs=[
            pl.BlockSpec((S, NUM_PREDICTORS, tile_t), lambda t: (0, 0, t)),
            pl.BlockSpec((H1, NUM_PREDICTORS + NUM_EMBEDDINGS), lambda t: (0, 0)),
            pl.BlockSpec((H1, 1), lambda t: (0, 0)),
            pl.BlockSpec((H2, H1), lambda t: (0, 0)),
            pl.BlockSpec((H2, 1), lambda t: (0, 0)),
            pl.BlockSpec((S, H2), lambda t: (0, 0)),
            pl.BlockSpec((S, 1), lambda t: (0, 0)),
        ],
        out_specs=pl.BlockSpec((S, tile_t), lambda t: (0, t)),
        compiler_params=pltpu.CompilerParams(
            dimension_semantics=("parallel",),
            vmem_limit_bytes=48 * 1024 * 1024),
        cost_estimate=cost,
    )(x_t, w1c, b1_c, w2_t, b2_c, ws, bs)

    return out[:, :T]                                 # (S, T)


# ------------------------- pure-JAX reference (check) -----------------------
def reference_forward(params, inp, series_idx=None):
    emb_codes = inp[..., EMBED_IDX].astype(jnp.int32)
    emb = jnp.take(params["embedding"], emb_codes, axis=0)
    fwd_cols = jnp.array(FWD_COLS)
    x = jnp.concatenate([inp[..., fwd_cols], emb], axis=-1).astype(jnp.float32)
    h = jnp.tanh(x @ params["w1"] + params["b1"][0])
    h = jnp.tanh(h @ params["w2"] + params["b2"][0])
    if series_idx is None:
        ws = jnp.mean(params["series_weights"], axis=0, keepdims=True)  # (1, H)
        bs = jnp.mean(params["series_biases"], axis=0)                  # (1,)
        return jnp.sum(h * ws[:, None, :], axis=-1) + bs
    sel = jnp.asarray(series_idx, dtype=jnp.int32)
    ws = params["series_weights"][sel]                                  # (S, H)
    bs = params["series_biases"][sel]                                   # (S, 1)
    return jnp.sum(h * ws[:, None, :], axis=-1) + bs


# --------------------------- parameter construction -------------------------
def init_params(key):
    ks = jax.random.split(key, 7)
    lim1 = 1.0 / np.sqrt(IN_FEATURES)
    lim2 = 1.0 / np.sqrt(HIDDEN[0])
    return {
        "embedding": jax.random.normal(ks[0], (NUM_EMBEDDINGS, EMBEDDING_DIM),
                                       jnp.float32),
        "w1": jax.random.uniform(ks[1], (IN_FEATURES, HIDDEN[0]), jnp.float32,
                                 -lim1, lim1),
        "b1": jax.random.uniform(ks[2], (1, HIDDEN[0]), jnp.float32, -lim1, lim1),
        "w2": jax.random.uniform(ks[3], (HIDDEN[0], HIDDEN[1]), jnp.float32,
                                 -lim2, lim2),
        "b2": jax.random.uniform(ks[4], (1, HIDDEN[1]), jnp.float32, -lim2, lim2),
        "series_weights": 0.001 * jax.random.normal(
            ks[5], (NUM_SERIES, HIDDEN[-1]), jnp.float32),
        "series_biases": 0.001 * jax.random.normal(
            ks[6], (NUM_SERIES, 1), jnp.float32),
    }


# ----------------------------------- main -----------------------------------
if __name__ == "__main__":
    key = jax.random.PRNGKey(0)
    k_params, k_in, k_codes, k_in2, k_codes2 = jax.random.split(key, 5)

    params = init_params(k_params)

    # Case 1: small input (S=3, T=8), both series_idx paths.
    S, T = 3, 8
    inp = jax.random.normal(k_in, (S, T, NUM_PREDICTORS), jnp.float32)
    codes = jax.random.randint(k_codes, (S, T), 0, NUM_EMBEDDINGS)
    inp = inp.at[..., EMBED_IDX].set(codes.astype(jnp.float32))
    series_idx = [1, 3, 0]

    out_idx = multi_series_state_nn_forward(params, inp, series_idx=series_idx)
    out_idx = jax.block_until_ready(out_idx)
    ref_idx = reference_forward(params, inp, series_idx=series_idx)

    out_none = multi_series_state_nn_forward(params, inp, series_idx=None)
    out_none = jax.block_until_ready(out_none)
    ref_none = reference_forward(params, inp, series_idx=None)

    assert out_idx.shape == (S, T) and out_none.shape == (S, T)
    np.testing.assert_allclose(np.asarray(out_idx), np.asarray(ref_idx),
                               atol=1e-4, rtol=1e-4)
    np.testing.assert_allclose(np.asarray(out_none), np.asarray(ref_none),
                               atol=1e-4, rtol=1e-4)

    # Case 2: exercise the multi-tile grid + time-padding path (T=300, tile=128).
    S2, T2 = 3, 300
    inp2 = jax.random.normal(k_in2, (S2, T2, NUM_PREDICTORS), jnp.float32)
    codes2 = jax.random.randint(k_codes2, (S2, T2), 0, NUM_EMBEDDINGS)
    inp2 = inp2.at[..., EMBED_IDX].set(codes2.astype(jnp.float32))
    out2 = multi_series_state_nn_forward(params, inp2, series_idx=[2, 0, 1],
                                         tile_t=128)
    out2 = jax.block_until_ready(out2)
    ref2 = reference_forward(params, inp2, series_idx=[2, 0, 1])
    assert out2.shape == (S2, T2)
    np.testing.assert_allclose(np.asarray(out2), np.asarray(ref2),
                               atol=1e-4, rtol=1e-4)

    print("KERNEL_OK")
</pallas_src>

<mosaic_0001>
module attributes {stable_mosaic.version = 11 : i64} {
  func.func @_mlp_series_kernel(%arg0: i32, %arg1: memref<3x8x128xf32, #tpu.memory_space<vmem>>, %arg2: memref<32x18xf32, #tpu.memory_space<vmem>>, %arg3: memref<32x1xf32, #tpu.memory_space<vmem>>, %arg4: memref<32x32xf32, #tpu.memory_space<vmem>>, %arg5: memref<32x1xf32, #tpu.memory_space<vmem>>, %arg6: memref<3x32xf32, #tpu.memory_space<vmem>>, %arg7: memref<3x1xf32, #tpu.memory_space<vmem>>, %arg8: memref<3x128xf32, #tpu.memory_space<vmem>>) attributes {dimension_semantics = [#tpu.dimension_semantics<parallel>], iteration_bounds = array<i64: 1>, scalar_prefetch = 0 : i64, scratch_operands = 0 : i64, tpu.core_type = #tpu.core_type<tc>, window_params = [{transform_indices = @transform_0, window_bounds = array<i64: 3, 8, 128>}, {pipeline_mode = #tpu.pipeline_mode<synchronous>, transform_indices = @transform_1, window_bounds = array<i64: 32, 18>}, {pipeline_mode = #tpu.pipeline_mode<synchronous>, transform_indices = @transform_2, window_bounds = array<i64: 32, 1>}, {pipeline_mode = #tpu.pipeline_mode<synchronous>, transform_indices = @transform_3, window_bounds = array<i64: 32, 32>}, {pipeline_mode = #tpu.pipeline_mode<synchronous>, transform_indices = @transform_4, window_bounds = array<i64: 32, 1>}, {pipeline_mode = #tpu.pipeline_mode<synchronous>, transform_indices = @transform_5, window_bounds = array<i64: 3, 32>}, {pipeline_mode = #tpu.pipeline_mode<synchronous>, transform_indices = @transform_6, window_bounds = array<i64: 3, 1>}, {transform_indices = @transform_7, window_bounds = array<i64: 3, 128>}]} {
    %c0 = arith.constant 0 : index
    %c0_0 = arith.constant 0 : index
    %0 = vector.load %arg2[%c0, %c0_0] : memref<32x18xf32, #tpu.memory_space<vmem>>, vector<32x18xf32>
    %c0_1 = arith.constant 0 : index
    %c0_2 = arith.constant 0 : index
    %1 = vector.load %arg3[%c0_1, %c0_2] : memref<32x1xf32, #tpu.memory_space<vmem>>, vector<32x1xf32>
    %c0_3 = arith.constant 0 : index
    %c0_4 = arith.constant 0 : index
    %2 = vector.load %arg4[%c0_3, %c0_4] : memref<32x32xf32, #tpu.memory_space<vmem>>, vector<32x32xf32>
    %c0_5 = arith.constant 0 : index
    %c0_6 = arith.constant 0 : index
    %3 = vector.load %arg5[%c0_5, %c0_6] : memref<32x1xf32, #tpu.memory_space<vmem>>, vector<32x1xf32>
    %c0_7 = arith.constant 0 : index
    %c0_8 = arith.constant 0 : index
    %4 = vector.load %arg6[%c0_7, %c0_8] : memref<3x32xf32, #tpu.memory_space<vmem>>, vector<3x32xf32>
    %c0_9 = arith.constant 0 : index
    %c0_10 = arith.constant 0 : index
    %5 = vector.load %arg7[%c0_9, %c0_10] : memref<3x1xf32, #tpu.memory_space<vmem>>, vector<3x1xf32>
    %6 = tpu.iota {dimensions = array<i32: 0>} : vector<10x128xi32>
    %c0_11 = arith.constant 0 : index
    %c0_12 = arith.constant 0 : index
    %c0_13 = arith.constant 0 : index
    %7 = vector.load %arg1[%c0_11, %c0_12, %c0_13] : memref<3x8x128xf32, #tpu.memory_space<vmem>>, vector<1x8x128xf32>
    %8 = vector.shape_cast %7 : vector<1x8x128xf32> to vector<8x128xf32>
    %9 = vector.extract_strided_slice %8 {offsets = [2, 0], sizes = [1, 128], strides = [1, 1]} : vector<8x128xf32> to vector<1x128xf32>
    %10 = arith.fptosi %9 : vector<1x128xf32> to vector<1x128xi32>
    %11 = vector.broadcast %10 : vector<1x128xi32> to vector<10x128xi32>
    %12 = arith.cmpi eq, %6, %11 : vector<10x128xi32>
    %13 = arith.extui %12 : vector<10x128xi1> to vector<10x128xi32>
    %14 = arith.sitofp %13 : vector<10x128xi32> to vector<10x128xf32>
    %15 = tpu.concatenate %8, %14 in 0 : vector<8x128xf32>, vector<10x128xf32> -> vector<18x128xf32>
    %cst = arith.constant dense<0.000000e+00> : vector<32x128xf32>
    %16 = tpu.matmul %0, %15, %cst {dimension_numbers = #tpu.dot_dimension_numbers<[1], [0], [0], [1], [0, 0, 1, 1], [], []>} : vector<32x18xf32>, vector<18x128xf32>, vector<32x128xf32> -> vector<32x128xf32>
    %17 = vector.broadcast %1 : vector<32x1xf32> to vector<32x128xf32>
    %18 = arith.addf %16, %17 : vector<32x128xf32>
    %19 = math.tanh %18 : vector<32x128xf32>
    %cst_14 = arith.constant dense<0.000000e+00> : vector<32x128xf32>
    %20 = tpu.matmul %2, %19, %cst_14 {dimension_numbers = #tpu.dot_dimension_numbers<[1], [0], [0], [1], [0, 0, 1, 1], [], []>} : vector<32x32xf32>, vector<32x128xf32>, vector<32x128xf32> -> vector<32x128xf32>
    %21 = vector.broadcast %3 : vector<32x1xf32> to vector<32x128xf32>
    %22 = arith.addf %20, %21 : vector<32x128xf32>
    %23 = math.tanh %22 : vector<32x128xf32>
    %24 = vector.extract_strided_slice %4 {offsets = [0, 0], sizes = [1, 32], strides = [1, 1]} : vector<3x32xf32> to vector<1x32xf32>
    %cst_15 = arith.constant dense<0.000000e+00> : vector<1x128xf32>
    %25 = tpu.matmul %24, %23, %cst_15 {dimension_numbers = #tpu.dot_dimension_numbers<[1], [0], [0], [1], [0, 0, 1, 1], [], []>} : vector<1x32xf32>, vector<32x128xf32>, vector<1x128xf32> -> vector<1x128xf32>
    %26 = vector.extract_strided_slice %5 {offsets = [0, 0], sizes = [1, 1], strides = [1, 1]} : vector<3x1xf32> to vector<1x1xf32>
    %27 = vector.broadcast %26 : vector<1x1xf32> to vector<1x128xf32>
    %28 = arith.addf %25, %27 : vector<1x128xf32>
    %c0_16 = arith.constant 0 : index
    %c0_17 = arith.constant 0 : index
    %29 = vector.load %arg8[%c0_16, %c0_17] : memref<3x128xf32, #tpu.memory_space<vmem>>, vector<1x128xf32>
    tpu.vector_store %arg8[%c0_16, %c0_17], %28 {strides = array<i32>} : memref<3x128xf32, #tpu.memory_space<vmem>>, vector<1x128xf32>,
    %c1 = arith.constant 1 : index
    %c0_18 = arith.constant 0 : index
    %c0_19 = arith.constant 0 : index
    %30 = vector.load %arg1[%c1, %c0_18, %c0_19] : memref<3x8x128xf32, #tpu.memory_space<vmem>>, vector<1x8x128xf32>
    %31 = vector.shape_cast %30 : vector<1x8x128xf32> to vector<8x128xf32>
    %32 = vector.extract_strided_slice %31 {offsets = [2, 0], sizes = [1, 128], strides = [1, 1]} : vector<8x128xf32> to vector<1x128xf32>
    %33 = arith.fptosi %32 : vector<1x128xf32> to vector<1x128xi32>
    %34 = vector.broadcast %33 : vector<1x128xi32> to vector<10x128xi32>
    %35 = arith.cmpi eq, %6, %34 : vector<10x128xi32>
    %36 = arith.extui %35 : vector<10x128xi1> to vector<10x128xi32>
    %37 = arith.sitofp %36 : vector<10x128xi32> to vector<10x128xf32>
    %38 = tpu.concatenate %31, %37 in 0 : vector<8x128xf32>, vector<10x128xf32> -> vector<18x128xf32>
    %cst_20 = arith.constant dense<0.000000e+00> : vector<32x128xf32>
    %39 = tpu.matmul %0, %38, %cst_20 {dimension_numbers = #tpu.dot_dimension_numbers<[1], [0], [0], [1], [0, 0, 1, 1], [], []>} : vector<32x18xf32>, vector<18x128xf32>, vector<32x128xf32> -> vector<32x128xf32>
    %40 = vector.broadcast %1 : vector<32x1xf32> to vector<32x128xf32>
    %41 = arith.addf %39, %40 : vector<32x128xf32>
    %42 = math.tanh %41 : vector<32x128xf32>
    %cst_21 = arith.constant dense<0.000000e+00> : vector<32x128xf32>
    %43 = tpu.matmul %2, %42, %cst_21 {dimension_numbers = #tpu.dot_dimension_numbers<[1], [0], [0], [1], [0, 0, 1, 1], [], []>} : vector<32x32xf32>, vector<32x128xf32>, vector<32x128xf32> -> vector<32x128xf32>
    %44 = vector.broadcast %3 : vector<32x1xf32> to vector<32x128xf32>
    %45 = arith.addf %43, %44 : vector<32x128xf32>
    %46 = math.tanh %45 : vector<32x128xf32>
    %47 = vector.extract_strided_slice %4 {offsets = [1, 0], sizes = [1, 32], strides = [1, 1]} : vector<3x32xf32> to vector<1x32xf32>
    %cst_22 = arith.constant dense<0.000000e+00> : vector<1x128xf32>
    %48 = tpu.matmul %47, %46, %cst_22 {dimension_numbers = #tpu.dot_dimension_numbers<[1], [0], [0], [1], [0, 0, 1, 1], [], []>} : vector<1x32xf32>, vector<32x128xf32>, vector<1x128xf32> -> vector<1x128xf32>
    %49 = vector.extract_strided_slice %5 {offsets = [1, 0], sizes = [1, 1], strides = [1, 1]} : vector<3x1xf32> to vector<1x1xf32>
    %50 = vector.broadcast %49 : vector<1x1xf32> to vector<1x128xf32>
    %51 = arith.addf %48, %50 : vector<1x128xf32>
    %c1_23 = arith.constant 1 : index
    %c0_24 = arith.constant 0 : index
    %52 = vector.load %arg8[%c1_23, %c0_24] : memref<3x128xf32, #tpu.memory_space<vmem>>, vector<1x128xf32>
    tpu.vector_store %arg8[%c1_23, %c0_24], %51 {strides = array<i32>} : memref<3x128xf32, #tpu.memory_space<vmem>>, vector<1x128xf32>,
    %c2 = arith.constant 2 : index
    %c0_25 = arith.constant 0 : index
    %c0_26 = arith.constant 0 : index
    %53 = vector.load %arg1[%c2, %c0_25, %c0_26] : memref<3x8x128xf32, #tpu.memory_space<vmem>>, vector<1x8x128xf32>
    %54 = vector.shape_cast %53 : vector<1x8x128xf32> to vector<8x128xf32>
    %55 = vector.extract_strided_slice %54 {offsets = [2, 0], sizes = [1, 128], strides = [1, 1]} : vector<8x128xf32> to vector<1x128xf32>
    %56 = arith.fptosi %55 : vector<1x128xf32> to vector<1x128xi32>
    %57 = vector.broadcast %56 : vector<1x128xi32> to vector<10x128xi32>
    %58 = arith.cmpi eq, %6, %57 : vector<10x128xi32>
    %59 = arith.extui %58 : vector<10x128xi1> to vector<10x128xi32>
    %60 = arith.sitofp %59 : vector<10x128xi32> to vector<10x128xf32>
    %61 = tpu.concatenate %54, %60 in 0 : vector<8x128xf32>, vector<10x128xf32> -> vector<18x128xf32>
    %cst_27 = arith.constant dense<0.000000e+00> : vector<32x128xf32>
    %62 = tpu.matmul %0, %61, %cst_27 {dimension_numbers = #tpu.dot_dimension_numbers<[1], [0], [0], [1], [0, 0, 1, 1], [], []>} : vector<32x18xf32>, vector<18x128xf32>, vector<32x128xf32> -> vector<32x128xf32>
    %63 = vector.broadcast %1 : vector<32x1xf32> to vector<32x128xf32>
    %64 = arith.addf %62, %63 : vector<32x128xf32>
    %65 = math.tanh %64 : vector<32x128xf32>
    %cst_28 = arith.constant dense<0.000000e+00> : vector<32x128xf32>
    %66 = tpu.matmul %2, %65, %cst_28 {dimension_numbers = #tpu.dot_dimension_numbers<[1], [0], [0], [1], [0, 0, 1, 1], [], []>} : vector<32x32xf32>, vector<32x128xf32>, vector<32x128xf32> -> vector<32x128xf32>
    %67 = vector.broadcast %3 : vector<32x1xf32> to vector<32x128xf32>
    %68 = arith.addf %66, %67 : vector<32x128xf32>
    %69 = math.tanh %68 : vector<32x128xf32>
    %70 = vector.extract_strided_slice %4 {offsets = [2, 0], sizes = [1, 32], strides = [1, 1]} : vector<3x32xf32> to vector<1x32xf32>
    %cst_29 = arith.constant dense<0.000000e+00> : vector<1x128xf32>
    %71 = tpu.matmul %70, %69, %cst_29 {dimension_numbers = #tpu.dot_dimension_numbers<[1], [0], [0], [1], [0, 0, 1, 1], [], []>} : vector<1x32xf32>, vector<32x128xf32>, vector<1x128xf32> -> vector<1x128xf32>
    %72 = vector.extract_strided_slice %5 {offsets = [2, 0], sizes = [1, 1], strides = [1, 1]} : vector<3x1xf32> to vector<1x1xf32>
    %73 = vector.broadcast %72 : vector<1x1xf32> to vector<1x128xf32>
    %74 = arith.addf %71, %73 : vector<1x128xf32>
    %c2_30 = arith.constant 2 : index
    %c0_31 = arith.constant 0 : index
    %75 = vector.load %arg8[%c2_30, %c0_31] : memref<3x128xf32, #tpu.memory_space<vmem>>, vector<1x128xf32>
    tpu.vector_store %arg8[%c2_30, %c0_31], %74 {strides = array<i32>} : memref<3x128xf32, #tpu.memory_space<vmem>>, vector<1x128xf32>,
    return
  }
  func.func @transform_0(%arg0: i32) -> (i32, i32, i32) {
    %c0_i32 = arith.constant 0 : i32
    %c0_i32_0 = arith.constant 0 : i32
    %c0_i32_1 = arith.constant 0 : i32
    return %c0_i32, %c0_i32_0, %arg0 : i32, i32, i32
  }
  func.func @transform_1(%arg0: i32) -> (i32, i32) {
    %c0_i32 = arith.constant 0 : i32
    %c0_i32_0 = arith.constant 0 : i32
    %c0_i32_1 = arith.constant 0 : i32
    return %c0_i32, %c0_i32_0 : i32, i32
  }
  func.func @transform_2(%arg0: i32) -> (i32, i32) {
    %c0_i32 = arith.constant 0 : i32
    %c0_i32_0 = arith.constant 0 : i32
    %c0_i32_1 = arith.constant 0 : i32
    return %c0_i32, %c0_i32_0 : i32, i32
  }
  func.func @transform_3(%arg0: i32) -> (i32, i32) {
    %c0_i32 = arith.constant 0 : i32
    %c0_i32_0 = arith.constant 0 : i32
    %c0_i32_1 = arith.constant 0 : i32
    return %c0_i32, %c0_i32_0 : i32, i32
  }
  func.func @transform_4(%arg0: i32) -> (i32, i32) {
    %c0_i32 = arith.constant 0 : i32
    %c0_i32_0 = arith.constant 0 : i32
    %c0_i32_1 = arith.constant 0 : i32
    return %c0_i32, %c0_i32_0 : i32, i32
  }
  func.func @transform_5(%arg0: i32) -> (i32, i32) {
    %c0_i32 = arith.constant 0 : i32
    %c0_i32_0 = arith.constant 0 : i32
    %c0_i32_1 = arith.constant 0 : i32
    return %c0_i32, %c0_i32_0 : i32, i32
  }
  func.func @transform_6(%arg0: i32) -> (i32, i32) {
    %c0_i32 = arith.constant 0 : i32
    %c0_i32_0 = arith.constant 0 : i32
    %c0_i32_1 = arith.constant 0 : i32
    return %c0_i32, %c0_i32_0 : i32, i32
  }
  func.func @transform_7(%arg0: i32) -> (i32, i32) {
    %c0_i32 = arith.constant 0 : i32
    %c0_i32_0 = arith.constant 0 : i32
    return %c0_i32, %arg0 : i32, i32
  }
}

</mosaic_0001>

<llo_original>
// kernel: tpu_custom_call.1
$region0: #{tpu_custom_call.1}
  #allocation0 [shape = 'u32[]', space=smem, size = 0x4, offset = 0x4, fixed_abs, tag = 'smem constant byte address 0x4 - core index']
  #allocation1 [shape = 'u32[144,128]{1,0:T(1,128)}', space=vmem, size = 0x12000, scoped, tag = 'internal scratch']
  %s0 = inlined_call_operand.vmem [shape: f32[3,8,128], index: 0, kind: input, shape index: {}]
  %s1 = inlined_call_operand.vmem [shape: f32[32,18], index: 1, kind: input, shape index: {}]
  %s2 = inlined_call_operand.vmem [shape: f32[32,1], index: 2, kind: input, shape index: {}]
  %s3 = inlined_call_operand.vmem [shape: f32[32,32], index: 3, kind: input, shape index: {}]
  %s4 = inlined_call_operand.vmem [shape: f32[32,1], index: 4, kind: input, shape index: {}]
  %s5 = inlined_call_operand.vmem [shape: f32[3,32], index: 5, kind: input, shape index: {}]
  %s6 = inlined_call_operand.vmem [shape: f32[3,1], index: 6, kind: input, shape index: {}]
  %s7 = inlined_call_operand.hbm [shape: f32[3,128], index: 7, kind: output, shape index: {}]
  %s8 = sld [smem:[#allocation0]]
  $region38: #{tpu_custom_call.1} parent=0
    _
  %s10 = ssub.s32 1, %s8
  %s11 = scalar_select 0, %s10, %s8
  $region1: #{tpu_custom_call.1} parent=0
    #allocation2 [shape = 'u8[2048]{0}', space=vmem, size = 0x800, scoped, tag = 'output window, operand 0, single buffered']
    #allocation3 [shape = 's32[1]{0}', space=sflag, size = 0x4, scoped, tag = 'scoped memory for tpu_custom_call.1']
    %12 = vsyncpa [#allocation3], 0
    // Predicated region
    $region2: #{tpu_custom_call.1} parent=1 // pred_check
      _
    $region3: #{tpu_custom_call.1} parent=1 // pred_check_branch
      %14 = sbr.rel (0) target = $region5
    $region4: #{tpu_custom_call.1} parent=1 // pred_region
      _
    $region5: #{tpu_custom_call.1} parent=1 // pred_fallthru
      _
    // Predicated region
    $region6: #{tpu_custom_call.1} parent=1 // pred_check
      _
    $region7: #{tpu_custom_call.1} parent=1 // pred_check_branch
      %16 = sbr.rel (0) target = $region9
    $region8: #{tpu_custom_call.1} parent=1 // pred_region
      _
    $region9: #{tpu_custom_call.1} parent=1 // pred_fallthru
      _
    // Predicated region
    $region10: #{tpu_custom_call.1} parent=1 // pred_check
      _
    $region11: #{tpu_custom_call.1} parent=1 // pred_check_branch
      %18 = sbr.rel (0) target = $region13
    $region12: #{tpu_custom_call.1} parent=1 // pred_region
      _
    $region13: #{tpu_custom_call.1} parent=1 // pred_fallthru
      _
    // Predicated region
    $region14: #{tpu_custom_call.1} parent=1 // pred_check
      _
    $region15: #{tpu_custom_call.1} parent=1 // pred_check_branch
      %20 = sbr.rel (0) target = $region17
    $region16: #{tpu_custom_call.1} parent=1 // pred_region
      _
    $region17: #{tpu_custom_call.1} parent=1 // pred_fallthru
      _
    // Predicated region
    $region18: #{tpu_custom_call.1} parent=1 // pred_check
      _
    $region19: #{tpu_custom_call.1} parent=1 // pred_check_branch
      %22 = sbr.rel (0) target = $region21
    $region20: #{tpu_custom_call.1} parent=1 // pred_region
      _
    $region21: #{tpu_custom_call.1} parent=1 // pred_fallthru
      _
    // Predicated region
    $region22: #{tpu_custom_call.1} parent=1 // pred_check
      _
    $region23: #{tpu_custom_call.1} parent=1 // pred_check_branch
      %24 = sbr.rel (0) target = $region25
    $region24: #{tpu_custom_call.1} parent=1 // pred_region
      _
    $region25: #{tpu_custom_call.1} parent=1 // pred_fallthru
      _
    // Predicated region
    $region26: #{tpu_custom_call.1} parent=1 // pred_check
      _
    $region27: #{tpu_custom_call.1} parent=1 // pred_check_branch
      %26 = sbr.rel (0) target = $region29
    $region28: #{tpu_custom_call.1} parent=1 // pred_region
      _
    $region29: #{tpu_custom_call.1} parent=1 // pred_fallthru
      _
    %v27 = vld [vmem:[%s1] sm:$0xff]
    %v28 = vld [vmem:[%s1 + $0x8] sm:$0xff]
    %v29 = vld [vmem:[%s1 + $0x10] sm:$0xff]
    %v30 = vld [vmem:[%s1 + $0x18] sm:$0xff]
    %v31 = vld [vmem:[%s2] sm:$0xff]
    %v32 = vld [vmem:[%s2 + $0x8] sm:$0xff]
    %v33 = vld [vmem:[%s2 + $0x10] sm:$0xff]
    %v34 = vld [vmem:[%s2 + $0x18] sm:$0xff]
    %v35 = vld [vmem:[%s3] sm:$0xff]
    %v36 = vld [vmem:[%s3 + $0x8] sm:$0xff]
    %v37 = vld [vmem:[%s3 + $0x10] sm:$0xff]
    %v38 = vld [vmem:[%s3 + $0x18] sm:$0xff]
    %v39 = vld [vmem:[%s4] sm:$0xff]
    %v40 = vld [vmem:[%s4 + $0x8] sm:$0xff]
    %v41 = vld [vmem:[%s4 + $0x10] sm:$0xff]
    %v42 = vld [vmem:[%s4 + $0x18] sm:$0xff]
    %v43 = vld [vmem:[%s5] sm:$0x7]
    %v44 = vld [vmem:[%s6] sm:$0x7]
    %v45 = vlaneseq
    %v46 = vshrl.u32 %v45, 7
    %v47 = vadd.s32 %v46, 8
    %v48 = vld [vmem:[%s0] sm:$0xff]
    %v49 = vcvt.f32.s32.to.zero.pseudo %v48
    %v50 = vlaneseq
    %v51 = vshrl.u32 %v50, 7
    %v52 = vsub.s32 2, %v51
    %v53 = vrot.slane %v49, %v52
    %vm54 = vcmp.eq.s32.totalorder %v46, %v53
    %vm55 = vcmp.eq.s32.totalorder %v47, %v53
    %v56 = vsel %vm54, 1, 0
    %v57 = vsel %vm55, 1, 0
    %v58 = vcvt.s32.f32 %v56
    %v59 = vcvt.s32.f32 %v57
    %61 = vset.pattern.permute.xlu0 0
    %62 = vperm.xlu0 %61, %v31
    %v63 = vpop.permute.xlu0 %62
    %66 = vset.pattern.permute.xlu0 0
    %67 = vperm.xlu0 %66, %v32
    %v68 = vpop.permute.xlu0 %67
    %71 = vset.pattern.permute.xlu0 0
    %72 = vperm.xlu0 %71, %v33
    %v73 = vpop.permute.xlu0 %72
    %76 = vset.pattern.permute.xlu0 0
    %77 = vperm.xlu0 %76, %v34
    %v78 = vpop.permute.xlu0 %77
    %vm80 = vcmask 146432
    %v82 = vsel %vm80, %v27, 0
    %v85 = vsel %vm80, %v28, 0
    %v88 = vsel %vm80, %v29, 0
    %v91 = vsel %vm80, %v30, 0
    %vm93 = vcmask 1041408
    %v95 = vsel %vm93, %v59, 0
    %97 = vmatprep.subr.mxu0 0.0
    %98 = vmatpush1.msra.mxu0 %v48
    %99 = vmatprep.subr.mxu0 0.0
    %100 = vmatpush1.msra.mxu0 %v58
    %101 = vmatprep.subr.mxu0 0.0
    %102 = vmatpush1.msra.mxu0 %v95
    %103 = vmatprep.subr.mxu0 0.0
    %104 = vmatpush1.msra.mxu0 0.0
    %105 = vmatprep.subr.mxu0 0.0
    %106 = vmatpush1.msra.mxu0 0.0
    %107 = vmatprep.subr.mxu0 0.0
    %108 = vmatpush1.msra.mxu0 0.0
    %109 = vmatprep.subr.mxu0 0.0
    %110 = vmatpush1.msra.mxu0 0.0
    %111 = vmatprep.subr.mxu0 0.0
    %112 = vmatpush1.msra.mxu0 0.0
    %113 = vmatprep.subr.mxu0 0.0
    %114 = vmatpush1.msra.mxu0 0.0
    %115 = vmatprep.subr.mxu0 0.0
    %116 = vmatpush1.msra.mxu0 0.0
    %117 = vmatprep.subr.mxu0 0.0
    %118 = vmatpush1.msra.mxu0 0.0
    %119 = vmatprep.subr.mxu0 0.0
    %120 = vmatpush1.msra.mxu0 0.0
    %121 = vmatprep.subr.mxu0 0.0
    %122 = vmatpush1.msra.mxu0 0.0
    %123 = vmatprep.subr.mxu0 0.0
    %124 = vmatpush1.msra.mxu0 0.0
    %125 = vmatprep.subr.mxu0 0.0
    %126 = vmatpush1.msra.mxu0 0.0
    %127 = vmatprep.subr.mxu0 0.0
    %128 = vmatpush1.msra.mxu0 0.0
    %129 = vmatprep.subr.mxu0 0.0
    %130 = vmatpush1.msra.mxu0 0.0
    %131 = vmatprep.subr.mxu0 0.0
    %132 = vmatpush1.msra.mxu0 0.0
    %133 = vmatprep.subr.mxu0 0.0
    %134 = vmatpush1.msra.mxu0 0.0
    %135 = vmatprep.subr.mxu0 0.0
    %136 = vmatpush1.msra.mxu0 0.0
    %137 = vmatprep.subr.mxu0 0.0
    %138 = vmatpush1.msra.mxu0 0.0
    %139 = vmatprep.subr.mxu0 0.0
    %140 = vmatpush1.msra.mxu0 0.0
    %141 = vmatprep.subr.mxu0 0.0
    %142 = vmatpush1.msra.mxu0 0.0
    %143 = vmatprep.subr.mxu0 0.0
    %144 = vmatpush1.msra.mxu0 0.0
    %145 = vmatprep.subr.mxu0 0.0
    %146 = vmatpush1.msra.mxu0 0.0
    %147 = vmatprep.subr.mxu0 0.0
    %148 = vmatpush1.msra.mxu0 0.0
    %149 = vmatprep.subr.mxu0 0.0
    %150 = vmatpush1.msra.mxu0 0.0
    %151 = vmatprep.subr.mxu0 0.0
    %152 = vmatpush1.msra.mxu0 0.0
    %153 = vmatprep.subr.mxu0 0.0
    %154 = vmatpush1.msra.mxu0 0.0
    %155 = vmatprep.subr.mxu0 0.0
    %156 = vmatpush1.msra.mxu0 0.0
    %157 = vmatprep.subr.mxu0 0.0
    %158 = vmatpush1.msra.mxu0 0.0
    %159 = vmatprep.subr.mxu0 0.0
    %160 = vmatpush1.msra.mxu0 0.0
    %161 = vmatprep.mubr.f32.mxu0 0.0
    %162 = vmatmul.mubr.f32.gmra.mrb[0].mxu0 %v82
    %v163 = vpop.f32.mrb[0].mxu0
    %v164 = vadd.f32 %v63, %v163
    %v165 = vpop.f32.mrb[0].mxu0
    %166 = vmatprep.mubr.f32.mxu0 0.0
    %167 = vmatmul.mubr.f32.gmra.mrb[0].mxu0 %v85
    %v168 = vpop.f32.mrb[0].mxu0
    %v169 = vadd.f32 %v68, %v168
    %v170 = vpop.f32.mrb[0].mxu0
    %171 = vmatprep.mubr.f32.mxu0 0.0
    %172 = vmatmul.mubr.f32.gmra.mrb[0].mxu0 %v88
    %v173 = vpop.f32.mrb[0].mxu0
    %v174 = vadd.f32 %v73, %v173
    %v175 = vpop.f32.mrb[0].mxu0
    %176 = vmatprep.mubr.f32.mxu0 0.0
    %177 = vmatmul.mubr.f32.gmra.mrb[0].mxu0 %v91
    %v178 = vpop.f32.mrb[0].mxu0
    %v179 = vadd.f32 %v78, %v178
    %v180 = vpop.f32.mrb[0].mxu0
    %181 = vdwg.mxu0
    %v182 = vtanh.pop %v164
    %v183 = vtanh.pop %v169
    %v184 = vtanh.pop %v174
    %v185 = vtanh.pop %v179
    %187 = vset.pattern.permute.xlu0 0
    %188 = vperm.xlu0 %187, %v39
    %v189 = vpop.permute.xlu0 %188
    %192 = vset.pattern.permute.xlu0 0
    %193 = vperm.xlu0 %192, %v40
    %v194 = vpop.permute.xlu0 %193
    %197 = vset.pattern.permute.xlu0 0
    %198 = vperm.xlu0 %197, %v41
    %v199 = vpop.permute.xlu0 %198
    %202 = vset.pattern.permute.xlu0 0
    %203 = vperm.xlu0 %202, %v42
    %v204 = vpop.permute.xlu0 %203
    %vm206 = vcmask 261120
    %v208 = vsel %vm206, %v35, 0
    %v211 = vsel %vm206, %v36, 0
    %v214 = vsel %vm206, %v37, 0
    %v217 = vsel %vm206, %v38, 0
    %219 = vmatprep.subr.mxu0 0.0
    %220 = vmatpush1.msra.mxu0 %v182
    %221 = vmatprep.subr.mxu0 0.0
    %222 = vmatpush1.msra.mxu0 %v183
    %223 = vmatprep.subr.mxu0 0.0
    %224 = vmatpush1.msra.mxu0 %v184
    %225 = vmatprep.subr.mxu0 0.0
    %226 = vmatpush1.msra.mxu0 %v185
    %227 = vmatprep.subr.mxu0 0.0
    %228 = vmatpush1.msra.mxu0 0.0
    %229 = vmatprep.subr.mxu0 0.0
    %230 = vmatpush1.msra.mxu0 0.0
    %231 = vmatprep.subr.mxu0 0.0
    %232 = vmatpush1.msra.mxu0 0.0
    %233 = vmatprep.subr.mxu0 0.0
    %234 = vmatpush1.msra.mxu0 0.0
    %235 = vmatprep.subr.mxu0 0.0
    %236 = vmatpush1.msra.mxu0 0.0
    %237 = vmatprep.subr.mxu0 0.0
    %238 = vmatpush1.msra.mxu0 0.0
    %239 = vmatprep.subr.mxu0 0.0
    %240 = vmatpush1.msra.mxu0 0.0
    %241 = vmatprep.subr.mxu0 0.0
    %242 = vmatpush1.msra.mxu0 0.0
    %243 = vmatprep.subr.mxu0 0.0
    %244 = vmatpush1.msra.mxu0 0.0
    %245 = vmatprep.subr.mxu0 0.0
    %246 = vmatpush1.msra.mxu0 0.0
    %247 = vmatprep.subr.mxu0 0.0
    %248 = vmatpush1.msra.mxu0 0.0
    %249 = vmatprep.subr.mxu0 0.0
    %250 = vmatpush1.msra.mxu0 0.0
    %251 = vmatprep.subr.mxu0 0.0
    %252 = vmatpush1.msra.mxu0 0.0
    %253 = vmatprep.subr.mxu0 0.0
    %254 = vmatpush1.msra.mxu0 0.0
    %255 = vmatprep.subr.mxu0 0.0
    %256 = vmatpush1.msra.mxu0 0.0
    %257 = vmatprep.subr.mxu0 0.0
    %258 = vmatpush1.msra.mxu0 0.0
    %259 = vmatprep.subr.mxu0 0.0
    %260 = vmatpush1.msra.mxu0 0.0
    %261 = vmatprep.subr.mxu0 0.0
    %262 = vmatpush1.msra.mxu0 0.0
    %263 = vmatprep.subr.mxu0 0.0
    %264 = vmatpush1.msra.mxu0 0.0
    %265 = vmatprep.subr.mxu0 0.0
    %266 = vmatpush1.msra.mxu0 0.0
    %267 = vmatprep.subr.mxu0 0.0
    %268 = vmatpush1.msra.mxu0 0.0
    %269 = vmatprep.subr.mxu0 0.0
    %270 = vmatpush1.msra.mxu0 0.0
    %271 = vmatprep.subr.mxu0 0.0
    %272 = vmatpush1.msra.mxu0 0.0
    %273 = vmatprep.subr.mxu0 0.0
    %274 = vmatpush1.msra.mxu0 0.0
    %275 = vmatprep.subr.mxu0 0.0
    %276 = vmatpush1.msra.mxu0 0.0
    %277 = vmatprep.subr.mxu0 0.0
    %278 = vmatpush1.msra.mxu0 0.0
    %279 = vmatprep.subr.mxu0 0.0
    %280 = vmatpush1.msra.mxu0 0.0
    %281 = vmatprep.subr.mxu0 0.0
    %282 = vmatpush1.msra.mxu0 0.0
    %283 = vmatprep.mubr.f32.mxu0 0.0
    %284 = vmatmul.mubr.f32.gmra.mrb[0].mxu0 %v208
    %v285 = vpop.f32.mrb[0].mxu0
    %v286 = vadd.f32 %v189, %v285
    %v287 = vpop.f32.mrb[0].mxu0
    %288 = vmatprep.mubr.f32.mxu0 0.0
    %289 = vmatmul.mubr.f32.gmra.mrb[0].mxu0 %v211
    %v290 = vpop.f32.mrb[0].mxu0
    %v291 = vadd.f32 %v194, %v290
    %v292 = vpop.f32.mrb[0].mxu0
    %293 = vmatprep.mubr.f32.mxu0 0.0
    %294 = vmatmul.mubr.f32.gmra.mrb[0].mxu0 %v214
    %v295 = vpop.f32.mrb[0].mxu0
    %v296 = vadd.f32 %v199, %v295
    %v297 = vpop.f32.mrb[0].mxu0
    %298 = vmatprep.mubr.f32.mxu0 0.0
    %299 = vmatmul.mubr.f32.gmra.mrb[0].mxu0 %v217
    %v300 = vpop.f32.mrb[0].mxu0
    %v301 = vadd.f32 %v204, %v300
    %v302 = vpop.f32.mrb[0].mxu0
    %303 = vdwg.mxu0
    %v304 = vtanh.pop %v286
    %v305 = vtanh.pop %v291
    %v306 = vtanh.pop %v296
    %v307 = vtanh.pop %v301
    %309 = vset.pattern.permute.xlu0 0
    %310 = vperm.xlu0 %309, %v44
    %v311 = vpop.permute.xlu0 %310
    %v314 = vsel %vm206, %v43, 0
    %316 = vmatprep.subr.mxu0 0.0
    %317 = vmatpush1.msra.mxu0 %v304
    %318 = vmatprep.subr.mxu0 0.0
    %319 = vmatpush1.msra.mxu0 %v305
    %320 = vmatprep.subr.mxu0 0.0
    %321 = vmatpush1.msra.mxu0 %v306
    %322 = vmatprep.subr.mxu0 0.0
    %323 = vmatpush1.msra.mxu0 %v307
    %324 = vmatprep.subr.mxu0 0.0
    %325 = vmatpush1.msra.mxu0 0.0
    %326 = vmatprep.subr.mxu0 0.0
    %327 = vmatpush1.msra.mxu0 0.0
    %328 = vmatprep.subr.mxu0 0.0
    %329 = vmatpush1.msra.mxu0 0.0
    %330 = vmatprep.subr.mxu0 0.0
    %331 = vmatpush1.msra.mxu0 0.0
    %332 = vmatprep.subr.mxu0 0.0
    %333 = vmatpush1.msra.mxu0 0.0
    %334 = vmatprep.subr.mxu0 0.0
    %335 = vmatpush1.msra.mxu0 0.0
    %336 = vmatprep.subr.mxu0 0.0
    %337 = vmatpush1.msra.mxu0 0.0
    %338 = vmatprep.subr.mxu0 0.0
    %339 = vmatpush1.msra.mxu0 0.0
    %340 = vmatprep.subr.mxu0 0.0
    %341 = vmatpush1.msra.mxu0 0.0
    %342 = vmatprep.subr.mxu0 0.0
    %343 = vmatpush1.msra.mxu0 0.0
    %344 = vmatprep.subr.mxu0 0.0
    %345 = vmatpush1.msra.mxu0 0.0
    %346 = vmatprep.subr.mxu0 0.0
    %347 = vmatpush1.msra.mxu0 0.0
    %348 = vmatprep.subr.mxu0 0.0
    %349 = vmatpush1.msra.mxu0 0.0
    %350 = vmatprep.subr.mxu0 0.0
    %351 = vmatpush1.msra.mxu0 0.0
    %352 = vmatprep.subr.mxu0 0.0
    %353 = vmatpush1.msra.mxu0 0.0
    %354 = vmatprep.subr.mxu0 0.0
    %355 = vmatpush1.msra.mxu0 0.0
    %356 = vmatprep.subr.mxu0 0.0
    %357 = vmatpush1.msra.mxu0 0.0
    %358 = vmatprep.subr.mxu0 0.0
    %359 = vmatpush1.msra.mxu0 0.0
    %360 = vmatprep.subr.mxu0 0.0
    %361 = vmatpush1.msra.mxu0 0.0
    %362 = vmatprep.subr.mxu0 0.0
    %363 = vmatpush1.msra.mxu0 0.0
    %364 = vmatprep.subr.mxu0 0.0
    %365 = vmatpush1.msra.mxu0 0.0
    %366 = vmatprep.subr.mxu0 0.0
    %367 = vmatpush1.msra.mxu0 0.0
    %368 = vmatprep.subr.mxu0 0.0
    %369 = vmatpush1.msra.mxu0 0.0
    %370 = vmatprep.subr.mxu0 0.0
    %371 = vmatpush1.msra.mxu0 0.0
    %372 = vmatprep.subr.mxu0 0.0
    %373 = vmatpush1.msra.mxu0 0.0
    %374 = vmatprep.subr.mxu0 0.0
    %375 = vmatpush1.msra.mxu0 0.0
    %376 = vmatprep.subr.mxu0 0.0
    %377 = vmatpush1.msra.mxu0 0.0
    %378 = vmatprep.subr.mxu0 0.0
    %379 = vmatpush1.msra.mxu0 0.0
    %380 = vmatprep.mubr.f32.mxu0 0.0
    %381 = vmatmul.mubr.f32.gmra.mrb[0].mxu0 %v314
    %v382 = vpop.f32.mrb[0].mxu0
    %v383 = vadd.f32 %v311, %v382
    %v384 = vpop.f32.mrb[0].mxu0
    %385 = vdwg.mxu0
    %386 = vst [vmem:[#allocation2] sm:$0x1] %v383
    %s387 = scalar_lea.vmem %s0, 8
    %v388 = vld [vmem:[%s387] sm:$0xff]
    %v389 = vcvt.f32.s32.to.zero.pseudo %v388
    %v390 = vlaneseq
    %v391 = vshrl.u32 %v390, 7
    %v392 = vsub.s32 2, %v391
    %v393 = vrot.slane %v389, %v392
    %vm394 = vcmp.eq.s32.totalorder %v46, %v393
    %vm395 = vcmp.eq.s32.totalorder %v47, %v393
    %v396 = vsel %vm394, 1, 0
    %v397 = vsel %vm395, 1, 0
    %v398 = vcvt.s32.f32 %v396
    %v399 = vcvt.s32.f32 %v397
    %v401 = vsel %vm93, %v399, 0
    %403 = vmatprep.subr.mxu0 0.0
    %404 = vmatpush1.msra.mxu0 %v388
    %405 = vmatprep.subr.mxu0 0.0
    %406 = vmatpush1.msra.mxu0 %v398
    %407 = vmatprep.subr.mxu0 0.0
    %408 = vmatpush1.msra.mxu0 %v401
    %409 = vmatprep.subr.mxu0 0.0
    %410 = vmatpush1.msra.mxu0 0.0
    %411 = vmatprep.subr.mxu0 0.0
    %412 = vmatpush1.msra.mxu0 0.0
    %413 = vmatprep.subr.mxu0 0.0
    %414 = vmatpush1.msra.mxu0 0.0
    %415 = vmatprep.subr.mxu0 0.0
    %416 = vmatpush1.msra.mxu0 0.0
    %417 = vmatprep.subr.mxu0 0.0
    %418 = vmatpush1.msra.mxu0 0.0
    %419 = vmatprep.subr.mxu0 0.0
    %420 = vmatpush1.msra.mxu0 0.0
    %421 = vmatprep.subr.mxu0 0.0
    %422 = vmatpush1.msra.mxu0 0.0
    %423 = vmatprep.subr.mxu0 0.0
    %424 = vmatpush1.msra.mxu0 0.0
    %425 = vmatprep.subr.mxu0 0.0
    %426 = vmatpush1.msra.mxu0 0.0
    %427 = vmatprep.subr.mxu0 0.0
    %428 = vmatpush1.msra.mxu0 0.0
    %429 = vmatprep.subr.mxu0 0.0
    %430 = vmatpush1.msra.mxu0 0.0
    %431 = vmatprep.subr.mxu0 0.0
    %432 = vmatpush1.msra.mxu0 0.0
    %433 = vmatprep.subr.mxu0 0.0
    %434 = vmatpush1.msra.mxu0 0.0
    %435 = vmatprep.subr.mxu0 0.0
    %436 = vmatpush1.msra.mxu0 0.0
    %437 = vmatprep.subr.mxu0 0.0
    %438 = vmatpush1.msra.mxu0 0.0
    %439 = vmatprep.subr.mxu0 0.0
    %440 = vmatpush1.msra.mxu0 0.0
    %441 = vmatprep.subr.mxu0 0.0
    %442 = vmatpush1.msra.mxu0 0.0
    %443 = vmatprep.subr.mxu0 0.0
    %444 = vmatpush1.msra.mxu0 0.0
    %445 = vmatprep.subr.mxu0 0.0
    %446 = vmatpush1.msra.mxu0 0.0
    %447 = vmatprep.subr.mxu0 0.0
    %448 = vmatpush1.msra.mxu0 0.0
    %449 = vmatprep.subr.mxu0 0.0
    %450 = vmatpush1.msra.mxu0 0.0
    %451 = vmatprep.subr.mxu0 0.0
    %452 = vmatpush1.msra.mxu0 0.0
    %453 = vmatprep.subr.mxu0 0.0
    %454 = vmatpush1.msra.mxu0 0.0
    %455 = vmatprep.subr.mxu0 0.0
    %456 = vmatpush1.msra.mxu0 0.0
    %457 = vmatprep.subr.mxu0 0.0
    %458 = vmatpush1.msra.mxu0 0.0
    %459 = vmatprep.subr.mxu0 0.0
    %460 = vmatpush1.msra.mxu0 0.0
    %461 = vmatprep.subr.mxu0 0.0
    %462 = vmatpush1.msra.mxu0 0.0
    %463 = vmatprep.subr.mxu0 0.0
    %464 = vmatpush1.msra.mxu0 0.0
    %465 = vmatprep.subr.mxu0 0.0
    %466 = vmatpush1.msra.mxu0 0.0
    %467 = vmatprep.mubr.f32.mxu0 0.0
    %468 = vmatmul.mubr.f32.gmra.mrb[0].mxu0 %v82
    %v469 = vpop.f32.mrb[0].mxu0
    %v470 = vadd.f32 %v63, %v469
    %v471 = vpop.f32.mrb[0].mxu0
    %472 = vmatprep.mubr.f32.mxu0 0.0
    %473 = vmatmul.mubr.f32.gmra.mrb[0].mxu0 %v85
    %v474 = vpop.f32.mrb[0].mxu0
    %v475 = vadd.f32 %v68, %v474
    %v476 = vpop.f32.mrb[0].mxu0
    %477 = vmatprep.mubr.f32.mxu0 0.0
    %478 = vmatmul.mubr.f32.gmra.mrb[0].mxu0 %v88
    %v479 = vpop.f32.mrb[0].mxu0
    %v480 = vadd.f32 %v73, %v479
    %v481 = vpop.f32.mrb[0].mxu0
    %482 = vmatprep.mubr.f32.mxu0 0.0
    %483 = vmatmul.mubr.f32.gmra.mrb[0].mxu0 %v91
    %v484 = vpop.f32.mrb[0].mxu0
    %v485 = vadd.f32 %v78, %v484
    %v486 = vpop.f32.mrb[0].mxu0
    %487 = vdwg.mxu0
    %v488 = vtanh.pop %v470
    %v489 = vtanh.pop %v475
    %v490 = vtanh.pop %v480
    %v491 = vtanh.pop %v485
    %492 = vmatprep.subr.mxu0 0.0
    %493 = vmatpush1.msra.mxu0 %v488
    %494 = vmatprep.subr.mxu0 0.0
    %495 = vmatpush1.msra.mxu0 %v489
    %496 = vmatprep.subr.mxu0 0.0
    %497 = vmatpush1.msra.mxu0 %v490
    %498 = vmatprep.subr.mxu0 0.0
    %499 = vmatpush1.msra.mxu0 %v491
    %500 = vmatprep.subr.mxu0 0.0
    %501 = vmatpush1.msra.mxu0 0.0
    %502 = vmatprep.subr.mxu0 0.0
    %503 = vmatpush1.msra.mxu0 0.0
    %504 = vmatprep.subr.mxu0 0.0
    %505 = vmatpush1.msra.mxu0 0.0
    %506 = vmatprep.subr.mxu0 0.0
    %507 = vmatpush1.msra.mxu0 0.0
    %508 = vmatprep.subr.mxu0 0.0
    %509 = vmatpush1.msra.mxu0 0.0
    %510 = vmatprep.subr.mxu0 0.0
    %511 = vmatpush1.msra.mxu0 0.0
    %512 = vmatprep.subr.mxu0 0.0
    %513 = vmatpush1.msra.mxu0 0.0
    %514 = vmatprep.subr.mxu0 0.0
    %515 = vmatpush1.msra.mxu0 0.0
    %516 = vmatprep.subr.mxu0 0.0
    %517 = vmatpush1.msra.mxu0 0.0
    %518 = vmatprep.subr.mxu0 0.0
    %519 = vmatpush1.msra.mxu0 0.0
    %520 = vmatprep.subr.mxu0 0.0
    %521 = vmatpush1.msra.mxu0 0.0
    %522 = vmatprep.subr.mxu0 0.0
    %523 = vmatpush1.msra.mxu0 0.0
    %524 = vmatprep.subr.mxu0 0.0
    %525 = vmatpush1.msra.mxu0 0.0
    %526 = vmatprep.subr.mxu0 0.0
    %527 = vmatpush1.msra.mxu0 0.0
    %528 = vmatprep.subr.mxu0 0.0
    %529 = vmatpush1.msra.mxu0 0.0
    %530 = vmatprep.subr.mxu0 0.0
    %531 = vmatpush1.msra.mxu0 0.0
    %532 = vmatprep.subr.mxu0 0.0
    %533 = vmatpush1.msra.mxu0 0.0
    %534 = vmatprep.subr.mxu0 0.0
    %535 = vmatpush1.msra.mxu0 0.0
    %536 = vmatprep.subr.mxu0 0.0
    %537 = vmatpush1.msra.mxu0 0.0
    %538 = vmatprep.subr.mxu0 0.0
    %539 = vmatpush1.msra.mxu0 0.0
    %540 = vmatprep.subr.mxu0 0.0
    %541 = vmatpush1.msra.mxu0 0.0
    %542 = vmatprep.subr.mxu0 0.0
    %543 = vmatpush1.msra.mxu0 0.0
    %544 = vmatprep.subr.mxu0 0.0
    %545 = vmatpush1.msra.mxu0 0.0
    %546 = vmatprep.subr.mxu0 0.0
    %547 = vmatpush1.msra.mxu0 0.0
    %548 = vmatprep.subr.mxu0 0.0
    %549 = vmatpush1.msra.mxu0 0.0
    %550 = vmatprep.subr.mxu0 0.0
    %551 = vmatpush1.msra.mxu0 0.0
    %552 = vmatprep.subr.mxu0 0.0
    %553 = vmatpush1.msra.mxu0 0.0
    %554 = vmatprep.subr.mxu0 0.0
    %555 = vmatpush1.msra.mxu0 0.0
    %556 = vmatprep.mubr.f32.mxu0 0.0
    %557 = vmatmul.mubr.f32.gmra.mrb[0].mxu0 %v208
    %v558 = vpop.f32.mrb[0].mxu0
    %v559 = vadd.f32 %v189, %v558
    %v560 = vpop.f32.mrb[0].mxu0
    %561 = vmatprep.mubr.f32.mxu0 0.0
    %562 = vmatmul.mubr.f32.gmra.mrb[0].mxu0 %v211
    %v563 = vpop.f32.mrb[0].mxu0
    %v564 = vadd.f32 %v194, %v563
    %v565 = vpop.f32.mrb[0].mxu0
    %566 = vmatprep.mubr.f32.mxu0 0.0
    %567 = vmatmul.mubr.f32.gmra.mrb[0].mxu0 %v214
    %v568 = vpop.f32.mrb[0].mxu0
    %v569 = vadd.f32 %v199, %v568
    %v570 = vpop.f32.mrb[0].mxu0
    %571 = vmatprep.mubr.f32.mxu0 0.0
    %572 = vmatmul.mubr.f32.gmra.mrb[0].mxu0 %v217
    %v573 = vpop.f32.mrb[0].mxu0
    %v574 = vadd.f32 %v204, %v573
    %v575 = vpop.f32.mrb[0].mxu0
    %576 = vdwg.mxu0
    %v577 = vtanh.pop %v559
    %v578 = vtanh.pop %v564
    %v579 = vtanh.pop %v569
    %v580 = vtanh.pop %v574
    %v581 = vrot.slane %v43, 1
    %v582 = vrot.slane %v311, 1
    %v584 = vsel %vm206, %v581, 0
    %586 = vmatprep.subr.mxu0 0.0
    %587 = vmatpush1.msra.mxu0 %v577
    %588 = vmatprep.subr.mxu0 0.0
    %589 = vmatpush1.msra.mxu0 %v578
    %590 = vmatprep.subr.mxu0 0.0
    %591 = vmatpush1.msra.mxu0 %v579
    %592 = vmatprep.subr.mxu0 0.0
    %593 = vmatpush1.msra.mxu0 %v580
    %594 = vmatprep.subr.mxu0 0.0
    %595 = vmatpush1.msra.mxu0 0.0
    %596 = vmatprep.subr.mxu0 0.0
    %597 = vmatpush1.msra.mxu0 0.0
    %598 = vmatprep.subr.mxu0 0.0
    %599 = vmatpush1.msra.mxu0 0.0
    %600 = vmatprep.subr.mxu0 0.0
    %601 = vmatpush1.msra.mxu0 0.0
    %602 = vmatprep.subr.mxu0 0.0
    %603 = vmatpush1.msra.mxu0 0.0
    %604 = vmatprep.subr.mxu0 0.0
    %605 = vmatpush1.msra.mxu0 0.0
    %606 = vmatprep.subr.mxu0 0.0
    %607 = vmatpush1.msra.mxu0 0.0
    %608 = vmatprep.subr.mxu0 0.0
    %609 = vmatpush1.msra.mxu0 0.0
    %610 = vmatprep.subr.mxu0 0.0
    %611 = vmatpush1.msra.mxu0 0.0
    %612 = vmatprep.subr.mxu0 0.0
    %613 = vmatpush1.msra.mxu0 0.0
    %614 = vmatprep.subr.mxu0 0.0
    %615 = vmatpush1.msra.mxu0 0.0
    %616 = vmatprep.subr.mxu0 0.0
    %617 = vmatpush1.msra.mxu0 0.0
    %618 = vmatprep.subr.mxu0 0.0
    %619 = vmatpush1.msra.mxu0 0.0
    %620 = vmatprep.subr.mxu0 0.0
    %621 = vmatpush1.msra.mxu0 0.0
    %622 = vmatprep.subr.mxu0 0.0
    %623 = vmatpush1.msra.mxu0 0.0
    %624 = vmatprep.subr.mxu0 0.0
    %625 = vmatpush1.msra.mxu0 0.0
    %626 = vmatprep.subr.mxu0 0.0
    %627 = vmatpush1.msra.mxu0 0.0
    %628 = vmatprep.subr.mxu0 0.0
    %629 = vmatpush1.msra.mxu0 0.0
    %630 = vmatprep.subr.mxu0 0.0
    %631 = vmatpush1.msra.mxu0 0.0
    %632 = vmatprep.subr.mxu0 0.0
    %633 = vmatpush1.msra.mxu0 0.0
    %634 = vmatprep.subr.mxu0 0.0
    %635 = vmatpush1.msra.mxu0 0.0
    %636 = vmatprep.subr.mxu0 0.0
    %637 = vmatpush1.msra.mxu0 0.0
    %638 = vmatprep.subr.mxu0 0.0
    %639 = vmatpush1.msra.mxu0 0.0
    %640 = vmatprep.subr.mxu0 0.0
    %641 = vmatpush1.msra.mxu0 0.0
    %642 = vmatprep.subr.mxu0 0.0
    %643 = vmatpush1.msra.mxu0 0.0
    %644 = vmatprep.subr.mxu0 0.0
    %645 = vmatpush1.msra.mxu0 0.0
    %646 = vmatprep.subr.mxu0 0.0
    %647 = vmatpush1.msra.mxu0 0.0
    %648 = vmatprep.subr.mxu0 0.0
    %649 = vmatpush1.msra.mxu0 0.0
    %650 = vmatprep.mubr.f32.mxu0 0.0
    %651 = vmatmul.mubr.f32.gmra.mrb[0].mxu0 %v584
    %v652 = vpop.f32.mrb[0].mxu0
    %v653 = vadd.f32 %v582, %v652
    %v654 = vpop.f32.mrb[0].mxu0
    %655 = vdwg.mxu0
    %656 = vst [vmem:[#allocation2 + $0x1] sm:$0x1] %v653
    %s657 = scalar_lea.vmem %s0, 16
    %v658 = vld [vmem:[%s657] sm:$0xff]
    %v659 = vcvt.f32.s32.to.zero.pseudo %v658
    %v660 = vlaneseq
    %v661 = vshrl.u32 %v660, 7
    %v662 = vsub.s32 2, %v661
    %v663 = vrot.slane %v659, %v662
    %vm664 = vcmp.eq.s32.totalorder %v46, %v663
    %vm665 = vcmp.eq.s32.totalorder %v47, %v663
    %v666 = vsel %vm664, 1, 0
    %v667 = vsel %vm665, 1, 0
    %v668 = vcvt.s32.f32 %v666
    %v669 = vcvt.s32.f32 %v667
    %v671 = vsel %vm93, %v669, 0
    %673 = vmatprep.subr.mxu0 0.0
    %674 = vmatpush1.msra.mxu0 %v658
    %675 = vmatprep.subr.mxu0 0.0
    %676 = vmatpush1.msra.mxu0 %v668
    %677 = vmatprep.subr.mxu0 0.0
    %678 = vmatpush1.msra.mxu0 %v671
    %679 = vmatprep.subr.mxu0 0.0
    %680 = vmatpush1.msra.mxu0 0.0
    %681 = vmatprep.subr.mxu0 0.0
    %682 = vmatpush1.msra.mxu0 0.0
    %683 = vmatprep.subr.mxu0 0.0
    %684 = vmatpush1.msra.mxu0 0.0
    %685 = vmatprep.subr.mxu0 0.0
    %686 = vmatpush1.msra.mxu0 0.0
    %687 = vmatprep.subr.mxu0 0.0
    %688 = vmatpush1.msra.mxu0 0.0
    %689 = vmatprep.subr.mxu0 0.0
    %690 = vmatpush1.msra.mxu0 0.0
    %691 = vmatprep.subr.mxu0 0.0
    %692 = vmatpush1.msra.mxu0 0.0
    %693 = vmatprep.subr.mxu0 0.0
    %694 = vmatpush1.msra.mxu0 0.0
    %695 = vmatprep.subr.mxu0 0.0
    %696 = vmatpush1.msra.mxu0 0.0
    %697 = vmatprep.subr.mxu0 0.0
    %698 = vmatpush1.msra.mxu0 0.0
    %699 = vmatprep.subr.mxu0 0.0
    %700 = vmatpush1.msra.mxu0 0.0
    %701 = vmatprep.subr.mxu0 0.0
    %702 = vmatpush1.msra.mxu0 0.0
    %703 = vmatprep.subr.mxu0 0.0
    %704 = vmatpush1.msra.mxu0 0.0
    %705 = vmatprep.subr.mxu0 0.0
    %706 = vmatpush1.msra.mxu0 0.0
    %707 = vmatprep.subr.mxu0 0.0
    %708 = vmatpush1.msra.mxu0 0.0
    %709 = vmatprep.subr.mxu0 0.0
    %710 = vmatpush1.msra.mxu0 0.0
    %711 = vmatprep.subr.mxu0 0.0
    %712 = vmatpush1.msra.mxu0 0.0
    %713 = vmatprep.subr.mxu0 0.0
    %714 = vmatpush1.msra.mxu0 0.0
    %715 = vmatprep.subr.mxu0 0.0
    %716 = vmatpush1.msra.mxu0 0.0
    %717 = vmatprep.subr.mxu0 0.0
    %718 = vmatpush1.msra.mxu0 0.0
    %719 = vmatprep.subr.mxu0 0.0
    %720 = vmatpush1.msra.mxu0 0.0
    %721 = vmatprep.subr.mxu0 0.0
    %722 = vmatpush1.msra.mxu0 0.0
    %723 = vmatprep.subr.mxu0 0.0
    %724 = vmatpush1.msra.mxu0 0.0
    %725 = vmatprep.subr.mxu0 0.0
    %726 = vmatpush1.msra.mxu0 0.0
    %727 = vmatprep.subr.mxu0 0.0
    %728 = vmatpush1.msra.mxu0 0.0
    %729 = vmatprep.subr.mxu0 0.0
    %730 = vmatpush1.msra.mxu0 0.0
    %731 = vmatprep.subr.mxu0 0.0
    %732 = vmatpush1.msra.mxu0 0.0
    %733 = vmatprep.subr.mxu0 0.0
    %734 = vmatpush1.msra.mxu0 0.0
    %735 = vmatprep.subr.mxu0 0.0
    %736 = vmatpush1.msra.mxu0 0.0
    %737 = vmatprep.mubr.f32.mxu0 0.0
    %738 = vmatmul.mubr.f32.gmra.mrb[0].mxu0 %v82
    %v739 = vpop.f32.mrb[0].mxu0
    %v740 = vadd.f32 %v63, %v739
    %v741 = vpop.f32.mrb[0].mxu0
    %742 = vmatprep.mubr.f32.mxu0 0.0
    %743 = vmatmul.mubr.f32.gmra.mrb[0].mxu0 %v85
    %v744 = vpop.f32.mrb[0].mxu0
    %v745 = vadd.f32 %v68, %v744
    %v746 = vpop.f32.mrb[0].mxu0
    %747 = vmatprep.mubr.f32.mxu0 0.0
    %748 = vmatmul.mubr.f32.gmra.mrb[0].mxu0 %v88
    %v749 = vpop.f32.mrb[0].mxu0
    %v750 = vadd.f32 %v73, %v749
    %v751 = vpop.f32.mrb[0].mxu0
    %752 = vmatprep.mubr.f32.mxu0 0.0
    %753 = vmatmul.mubr.f32.gmra.mrb[0].mxu0 %v91
    %v754 = vpop.f32.mrb[0].mxu0
    %v755 = vadd.f32 %v78, %v754
    %v756 = vpop.f32.mrb[0].mxu0
    %757 = vdwg.mxu0
    %v758 = vtanh.pop %v740
    %v759 = vtanh.pop %v745
    %v760 = vtanh.pop %v750
    %v761 = vtanh.pop %v755
    %762 = vmatprep.subr.mxu0 0.0
    %763 = vmatpush1.msra.mxu0 %v758
    %764 = vmatprep.subr.mxu0 0.0
    %765 = vmatpush1.msra.mxu0 %v759
    %766 = vmatprep.subr.mxu0 0.0
    %767 = vmatpush1.msra.mxu0 %v760
    %768 = vmatprep.subr.mxu0 0.0
    %769 = vmatpush1.msra.mxu0 %v761
    %770 = vmatprep.subr.mxu0 0.0
    %771 = vmatpush1.msra.mxu0 0.0
    %772 = vmatprep.subr.mxu0 0.0
    %773 = vmatpush1.msra.mxu0 0.0
    %774 = vmatprep.subr.mxu0 0.0
    %775 = vmatpush1.msra.mxu0 0.0
    %776 = vmatprep.subr.mxu0 0.0
    %777 = vmatpush1.msra.mxu0 0.0
    %778 = vmatprep.subr.mxu0 0.0
    %779 = vmatpush1.msra.mxu0 0.0
    %780 = vmatprep.subr.mxu0 0.0
    %781 = vmatpush1.msra.mxu0 0.0
    %782 = vmatprep.subr.mxu0 0.0
    %783 = vmatpush1.msra.mxu0 0.0
    %784 = vmatprep.subr.mxu0 0.0
    %785 = vmatpush1.msra.mxu0 0.0
    %786 = vmatprep.subr.mxu0 0.0
    %787 = vmatpush1.msra.mxu0 0.0
    %788 = vmatprep.subr.mxu0 0.0
    %789 = vmatpush1.msra.mxu0 0.0
    %790 = vmatprep.subr.mxu0 0.0
    %791 = vmatpush1.msra.mxu0 0.0
    %792 = vmatprep.subr.mxu0 0.0
    %793 = vmatpush1.msra.mxu0 0.0
    %794 = vmatprep.subr.mxu0 0.0
    %795 = vmatpush1.msra.mxu0 0.0
    %796 = vmatprep.subr.mxu0 0.0
    %797 = vmatpush1.msra.mxu0 0.0
    %798 = vmatprep.subr.mxu0 0.0
    %799 = vmatpush1.msra.mxu0 0.0
    %800 = vmatprep.subr.mxu0 0.0
    %801 = vmatpush1.msra.mxu0 0.0
    %802 = vmatprep.subr.mxu0 0.0
    %803 = vmatpush1.msra.mxu0 0.0
    %804 = vmatprep.subr.mxu0 0.0
    %805 = vmatpush1.msra.mxu0 0.0
    %806 = vmatprep.subr.mxu0 0.0
    %807 = vmatpush1.msra.mxu0 0.0
    %808 = vmatprep.subr.mxu0 0.0
    %809 = vmatpush1.msra.mxu0 0.0
    %810 = vmatprep.subr.mxu0 0.0
    %811 = vmatpush1.msra.mxu0 0.0
    %812 = vmatprep.subr.mxu0 0.0
    %813 = vmatpush1.msra.mxu0 0.0
    %814 = vmatprep.subr.mxu0 0.0
    %815 = vmatpush1.msra.mxu0 0.0
    %816 = vmatprep.subr.mxu0 0.0
    %817 = vmatpush1.msra.mxu0 0.0
    %818 = vmatprep.subr.mxu0 0.0
    %819 = vmatpush1.msra.mxu0 0.0
    %820 = vmatprep.subr.mxu0 0.0
    %821 = vmatpush1.msra.mxu0 0.0
    %822 = vmatprep.subr.mxu0 0.0
    %823 = vmatpush1.msra.mxu0 0.0
    %824 = vmatprep.subr.mxu0 0.0
    %825 = vmatpush1.msra.mxu0 0.0
    %826 = vmatprep.mubr.f32.mxu0 0.0
    %827 = vmatmul.mubr.f32.gmra.mrb[0].mxu0 %v208
    %v828 = vpop.f32.mrb[0].mxu0
    %v829 = vadd.f32 %v189, %v828
    %v830 = vpop.f32.mrb[0].mxu0
    %831 = vmatprep.mubr.f32.mxu0 0.0
    %832 = vmatmul.mubr.f32.gmra.mrb[0].mxu0 %v211
    %v833 = vpop.f32.mrb[0].mxu0
    %v834 = vadd.f32 %v194, %v833
    %v835 = vpop.f32.mrb[0].mxu0
    %836 = vmatprep.mubr.f32.mxu0 0.0
    %837 = vmatmul.mubr.f32.gmra.mrb[0].mxu0 %v214
    %v838 = vpop.f32.mrb[0].mxu0
    %v839 = vadd.f32 %v199, %v838
    %v840 = vpop.f32.mrb[0].mxu0
    %841 = vmatprep.mubr.f32.mxu0 0.0
    %842 = vmatmul.mubr.f32.gmra.mrb[0].mxu0 %v217
    %v843 = vpop.f32.mrb[0].mxu0
    %v844 = vadd.f32 %v204, %v843
    %v845 = vpop.f32.mrb[0].mxu0
    %846 = vdwg.mxu0
    %v847 = vtanh.pop %v829
    %v848 = vtanh.pop %v834
    %v849 = vtanh.pop %v839
    %v850 = vtanh.pop %v844
    %v851 = vrot.slane %v43, 2
    %v852 = vrot.slane %v311, 2
    %v854 = vsel %vm206, %v851, 0
    %856 = vmatprep.subr.mxu0 0.0
    %857 = vmatpush1.msra.mxu0 %v847
    %858 = vmatprep.subr.mxu0 0.0
    %859 = vmatpush1.msra.mxu0 %v848
    %860 = vmatprep.subr.mxu0 0.0
    %861 = vmatpush1.msra.mxu0 %v849
    %862 = vmatprep.subr.mxu0 0.0
    %863 = vmatpush1.msra.mxu0 %v850
    %864 = vmatprep.subr.mxu0 0.0
    %865 = vmatpush1.msra.mxu0 0.0
    %866 = vmatprep.subr.mxu0 0.0
    %867 = vmatpush1.msra.mxu0 0.0
    %868 = vmatprep.subr.mxu0 0.0
    %869 = vmatpush1.msra.mxu0 0.0
    %870 = vmatprep.subr.mxu0 0.0
    %871 = vmatpush1.msra.mxu0 0.0
    %872 = vmatprep.subr.mxu0 0.0
    %873 = vmatpush1.msra.mxu0 0.0
    %874 = vmatprep.subr.mxu0 0.0
    %875 = vmatpush1.msra.mxu0 0.0
    %876 = vmatprep.subr.mxu0 0.0
    %877 = vmatpush1.msra.mxu0 0.0
    %878 = vmatprep.subr.mxu0 0.0
    %879 = vmatpush1.msra.mxu0 0.0
    %880 = vmatprep.subr.mxu0 0.0
    %881 = vmatpush1.msra.mxu0 0.0
    %882 = vmatprep.subr.mxu0 0.0
    %883 = vmatpush1.msra.mxu0 0.0
    %884 = vmatprep.subr.mxu0 0.0
    %885 = vmatpush1.msra.mxu0 0.0
    %886 = vmatprep.subr.mxu0 0.0
    %887 = vmatpush1.msra.mxu0 0.0
    %888 = vmatprep.subr.mxu0 0.0
    %889 = vmatpush1.msra.mxu0 0.0
    %890 = vmatprep.subr.mxu0 0.0
    %891 = vmatpush1.msra.mxu0 0.0
    %892 = vmatprep.subr.mxu0 0.0
    %893 = vmatpush1.msra.mxu0 0.0
    %894 = vmatprep.subr.mxu0 0.0
    %895 = vmatpush1.msra.mxu0 0.0
    %896 = vmatprep.subr.mxu0 0.0
    %897 = vmatpush1.msra.mxu0 0.0
    %898 = vmatprep.subr.mxu0 0.0
    %899 = vmatpush1.msra.mxu0 0.0
    %900 = vmatprep.subr.mxu0 0.0
    %901 = vmatpush1.msra.mxu0 0.0
    %902 = vmatprep.subr.mxu0 0.0
    %903 = vmatpush1.msra.mxu0 0.0
    %904 = vmatprep.subr.mxu0 0.0
    %905 = vmatpush1.msra.mxu0 0.0
    %906 = vmatprep.subr.mxu0 0.0
    %907 = vmatpush1.msra.mxu0 0.0
    %908 = vmatprep.subr.mxu0 0.0
    %909 = vmatpush1.msra.mxu0 0.0
    %910 = vmatprep.subr.mxu0 0.0
    %911 = vmatpush1.msra.mxu0 0.0
    %912 = vmatprep.subr.mxu0 0.0
    %913 = vmatpush1.msra.mxu0 0.0
    %914 = vmatprep.subr.mxu0 0.0
    %915 = vmatpush1.msra.mxu0 0.0
    %916 = vmatprep.subr.mxu0 0.0
    %917 = vmatpush1.msra.mxu0 0.0
    %918 = vmatprep.subr.mxu0 0.0
    %919 = vmatpush1.msra.mxu0 0.0
    %920 = vmatprep.mubr.f32.mxu0 0.0
    %921 = vmatmul.mubr.f32.gmra.mrb[0].mxu0 %v854
    %v922 = vpop.f32.mrb[0].mxu0
    %v923 = vadd.f32 %v852, %v922
    %v924 = vpop.f32.mrb[0].mxu0
    %925 = vdwg.mxu0
    %926 = vst [vmem:[#allocation2 + $0x2] sm:$0x1] %v923
    // Predicated region
    $region30: #{tpu_custom_call.1} parent=1 // pred_check
      _
    $region31: #{tpu_custom_call.1} parent=1 // pred_check_branch
      %928 = sbr.rel (0) target = $region33
    $region32: #{tpu_custom_call.1} parent=1 // pred_region
      %s930 = ssub.s32 64, 64
      %931 = vsyncadd [#allocation3], %s930
      %s933 = sshll.u32 [#allocation2], 4
      %s934 = int_to_ptr.vmem [resolvable:$true] %s933
      %936 = dma.vmem_to_hbm [thread:$0]  %s934, 64, %s7, [#allocation3]
    $region33: #{tpu_custom_call.1} parent=1 // pred_fallthru
      _
    // Predicated region
    $region34: #{tpu_custom_call.1} parent=1 // pred_check
      _
    $region35: #{tpu_custom_call.1} parent=1 // pred_check_branch
      %938 = sbr.rel (0) target = $region37
    $region36: #{tpu_custom_call.1} parent=1 // pred_region
      %939 = dma.done [#allocation3], 64
    $region37: #{tpu_custom_call.1} parent=1 // pred_fallthru
      _
    %940 = vsyncpa [#allocation3], 1

</llo_original>
